<compile_context>
chip_gen: v5e
topology: v5e:2x2
jax: 0.10.0
libtpu: 0.0.40
codegen_flags: <defaults>
</compile_context>

<pallas_src>
import functools

import numpy as np
import jax
import jax.numpy as jnp
from jax.experimental import pallas as pl
from jax.experimental.pallas import tpu as pltpu


_GATHER_TILE = 256   # output rows gathered per grid step; also the length bucket


# ----------------------------------------------------------------------------
# Duration predictor: one Pallas invocation over the batch-flattened sequence.
# ----------------------------------------------------------------------------
def _dp_kernel(x_ref, w1_ref, b1_ref, g1_ref, be1_ref,
               w2_ref, b2_ref, g2_ref, be2_ref,
               wl_ref, bl_ref, out_ref, *, seq_len, alpha, eps=1e-5):
    x = x_ref[...]                               # (M, D) with M = B*T
    m_rows = x.shape[0]

    # Batch-boundary masks, hoisted once and reused by both conv layers.
    row = jax.lax.broadcasted_iota(jnp.int32, (m_rows, 1), 0)
    pos = row % seq_len
    is_first = pos == 0                          # t == 0   -> no left neighbour
    is_last = pos == seq_len - 1                 # t == T-1 -> no right neighbour

    def conv1d_same(h, wf_ref, b_ref):
        # Fused 3-tap 'same' conv: a single (M, 3*Din) @ (3*Din, Dout) matmul.
        zero_row = jnp.zeros((1, h.shape[1]), h.dtype)
        h_prev = jnp.where(is_first, 0.0,
                           jnp.concatenate([zero_row, h[:-1]], axis=0))
        h_next = jnp.where(is_last, 0.0,
                           jnp.concatenate([h[1:], zero_row], axis=0))
        taps = jnp.concatenate([h_prev, h, h_next], axis=-1)      # (M, 3*Din)
        return (jnp.dot(taps, wf_ref[...], preferred_element_type=jnp.float32)
                + b_ref[...])

    def layer_norm(h, g_ref, be_ref):
        mu = jnp.mean(h, axis=-1, keepdims=True)
        var = jnp.mean((h - mu) ** 2, axis=-1, keepdims=True)
        return (h - mu) * jax.lax.rsqrt(var + eps) * g_ref[...] + be_ref[...]

    h = conv1d_same(x, w1_ref, b1_ref)
    h = jnp.maximum(layer_norm(h, g1_ref, be1_ref), 0.0)
    h = conv1d_same(h, w2_ref, b2_ref)
    h = jnp.maximum(layer_norm(h, g2_ref, be2_ref), 0.0)
    # Final linear (H -> 1) as wl (1,H) contracted with h (M,H) over H (the
    # attention-scores NT pattern): writes a lane-dense (1, M) row instead of
    # an (M, 1) column of masked single-lane stores.
    y = jax.lax.dot_general(wl_ref[...], h, (((1,), (1,)), ((), ())),
                            preferred_element_type=jnp.float32)   # (1, M)
    out_ref[...] = (y + bl_ref[...]) * alpha


def duration_predictor(x, params, alpha):
    (w1, b1, g1, be1, w2, b2, g2, be2, wl, bl) = params
    B, T, D = x.shape
    H = w1.shape[2]
    M = B * T
    xf = x.reshape(M, D)                  # flatten the batch; whole thing fits VMEM
    w1f = w1.reshape(3 * D, H)            # fuse the 3 conv taps into one weight
    w2f = w2.reshape(3 * H, H)
    wlr = wl.reshape(1, H)                # row vector for the lane-dense projection
    out = pl.pallas_call(
        functools.partial(_dp_kernel, seq_len=T, alpha=alpha),
        out_shape=jax.ShapeDtypeStruct((1, M), jnp.float32),
    )(xf, w1f, b1, g1, be1, w2f, b2, g2, be2, wlr, bl)
    return out.reshape(B, T)              # (B, T) log-lengths


# ----------------------------------------------------------------------------
# repeat_interleave + pad_sequence as a tiled one-hot gather kernel
# ----------------------------------------------------------------------------
def _gather_kernel(gidx_ref, x_ref, o_ref):
    x = x_ref[0]                                  # (T, D) source rows (resident per batch)
    idx = gidx_ref[0]                             # (TILE, 1) int32; -1 == padding
    src_len = x.shape[0]
    tile = idx.shape[0]
    # One-hot gather on the MXU: onehot[i, t] = (idx[i] == t).  Padded entries
    # (-1) never match, so padded rows come out zero (pad_sequence semantics).
    lane_t = jax.lax.broadcasted_iota(jnp.int32, (tile, src_len), 1)
    onehot = (idx == lane_t).astype(x.dtype)      # (TILE, T)
    o_ref[0] = jnp.dot(onehot, x,
                       preferred_element_type=jnp.float32).astype(o_ref.dtype)


def gather_rows(x, gidx, tile):
    """x: (B, T, D); gidx: (B, L) int32 with -1 marking padding; L % tile == 0."""
    B, T, D = x.shape
    L = gidx.shape[1]
    n_tiles = L // tile
    gidx_col = gidx[..., None]                    # (B, L, 1): per-row index column
    return pl.pallas_call(
        _gather_kernel,
        out_shape=jax.ShapeDtypeStruct((B, L, D), x.dtype),
        grid=(B, n_tiles),
        in_specs=[
            pl.BlockSpec((1, tile, 1), lambda b, t: (b, t, 0)),   # per-tile indices
            pl.BlockSpec((1, T, D), lambda b, t: (b, 0, 0)),      # source seq, resident over t
        ],
        out_specs=pl.BlockSpec((1, tile, D), lambda b, t: (b, t, 0)),
        compiler_params=pltpu.CompilerParams(
            dimension_semantics=("parallel", "parallel"),   # 2 TCs on v7x; neutral elsewhere
            vmem_limit_bytes=32 * 1024 * 1024),              # fits v7x's 64 MiB with headroom
    )(gidx_col, x)


# ----------------------------------------------------------------------------
# LengthRegulator forward
# ----------------------------------------------------------------------------
def length_regulator(x, params, alpha=1.0, true_durations=None):
    B, T, D = x.shape
    log_lengths = duration_predictor(x, params, alpha)            # (B, T)

    if true_durations is None:                                    # eval-mode path
        lengths = jnp.exp(jax.lax.stop_gradient(log_lengths))
        min_len = T
    else:                                                         # training-mode path
        lengths = true_durations
        min_len = min(true_durations.shape[1], T)
    durations = jnp.round(lengths).astype(jnp.int32)[:, :min_len]

    totals = jnp.sum(durations, axis=1)                           # (B,)
    # TODO(synk): the output length is data-dependent (torch's pad_sequence), so
    # a host sync is unavoidable for the static out_shape; bucketing it to a
    # multiple of the gather tile keeps the set of compiled shapes small.
    max_len = max(int(jax.device_get(jnp.max(totals))), 1)
    padded_len = pl.cdiv(max_len, _GATHER_TILE) * _GATHER_TILE

    csum = jnp.cumsum(durations, axis=1)
    pos = jnp.arange(padded_len, dtype=jnp.int32)
    gidx = jax.vmap(lambda c: jnp.searchsorted(c, pos, side="right"))(csum)
    gidx = jnp.minimum(gidx, min_len - 1)
    valid = pos[None, :] < totals[:, None]
    gidx = jnp.where(valid, gidx, -1).astype(jnp.int32)           # -1 -> zero (pad) row

    res = gather_rows(x, gidx, _GATHER_TILE)                      # (B, padded_len, D)
    return res[:, :max_len], log_lengths


# ----------------------------------------------------------------------------
# Pure-JAX / numpy references for verification
# ----------------------------------------------------------------------------
def _dp_reference(x, params, alpha, eps=1e-5):
    (w1, b1, g1, be1, w2, b2, g2, be2, wl, bl) = params

    def conv(h, w, b):
        hp = jnp.pad(h, ((0, 0), (1, 0), (0, 0)))[:, :-1]
        hn = jnp.pad(h, ((0, 0), (0, 1), (0, 0)))[:, 1:]
        return hp @ w[0] + h @ w[1] + hn @ w[2] + b

    def ln(h, g, be):
        mu = h.mean(-1, keepdims=True)
        var = ((h - mu) ** 2).mean(-1, keepdims=True)
        return (h - mu) / jnp.sqrt(var + eps) * g + be

    h = jnp.maximum(ln(conv(x, w1, b1), g1, be1), 0.0)
    h = jnp.maximum(ln(conv(h, w2, b2), g2, be2), 0.0)
    return (h @ wl + bl)[..., 0] * alpha


def _regulate_reference(x, log_lengths, max_len):
    x = np.asarray(x)
    dur = np.round(np.exp(np.asarray(log_lengths))).astype(np.int32)
    B, T, D = x.shape
    out = np.zeros((B, max_len, D), np.float32)
    for b in range(B):
        rep = np.repeat(x[b], dur[b], axis=0)
        out[b, : rep.shape[0]] = rep
    return out


# ----------------------------------------------------------------------------
def init_params(key, input_size, hidden_size):
    ks = jax.random.split(key, 8)
    D, H = input_size, hidden_size
    w1 = 0.1 * jax.random.normal(ks[0], (3, D, H), jnp.float32)
    b1 = 0.01 * jax.random.normal(ks[1], (1, H), jnp.float32)
    g1 = 1.0 + 0.05 * jax.random.normal(ks[2], (1, H), jnp.float32)
    be1 = 0.05 * jax.random.normal(ks[3], (1, H), jnp.float32)
    w2 = 0.1 * jax.random.normal(ks[4], (3, H, H), jnp.float32)
    b2 = 0.01 * jax.random.normal(ks[5], (1, H), jnp.float32)
    g2 = jnp.ones((1, H), jnp.float32)
    be2 = jnp.zeros((1, H), jnp.float32)
    wl = 0.1 * jax.random.normal(ks[6], (H, 1), jnp.float32)
    bl = 0.5 * jnp.ones((1, 1), jnp.float32)
    return (w1, b1, g1, be1, w2, b2, g2, be2, wl, bl)


if __name__ == "__main__":
    B, T, D, H = 2, 8, 32, 32
    alpha = 1.0
    key = jax.random.PRNGKey(0)
    kx, kp = jax.random.split(key)
    x = jax.random.normal(kx, (B, T, D), jnp.float32)
    params = init_params(kp, D, H)

    res, log_lengths = length_regulator(x, params, alpha=alpha)
    jax.block_until_ready(res)
    jax.block_until_ready(log_lengths)

    # Duration predictor vs pure-JAX reference.
    ll_ref = _dp_reference(x, params, alpha)
    assert np.allclose(np.asarray(log_lengths), np.asarray(ll_ref),
                       rtol=2e-2, atol=2e-2), "duration predictor mismatch"

    # Length regulation vs numpy repeat_interleave/pad_sequence, driven by the
    # kernel's own log-lengths so rounding decisions are identical.
    res_ref = _regulate_reference(x, np.asarray(log_lengths), res.shape[1])
    assert np.allclose(np.asarray(res), res_ref, rtol=1e-5, atol=1e-5), \
        "length regulation mismatch"

    print("KERNEL_OK")
</pallas_src>

<mosaic_0001>
module attributes {stable_mosaic.version = 11 : i64} {
  func.func @_dp_kernel(%arg0: memref<16x32xf32, #tpu.memory_space<vmem>>, %arg1: memref<96x32xf32, #tpu.memory_space<vmem>>, %arg2: memref<1x32xf32, #tpu.memory_space<vmem>>, %arg3: memref<1x32xf32, #tpu.memory_space<vmem>>, %arg4: memref<1x32xf32, #tpu.memory_space<vmem>>, %arg5: memref<96x32xf32, #tpu.memory_space<vmem>>, %arg6: memref<1x32xf32, #tpu.memory_space<vmem>>, %arg7: memref<1x32xf32, #tpu.memory_space<vmem>>, %arg8: memref<1x32xf32, #tpu.memory_space<vmem>>, %arg9: memref<1x32xf32, #tpu.memory_space<vmem>>, %arg10: memref<1x1xf32, #tpu.memory_space<vmem>>, %arg11: memref<1x16xf32, #tpu.memory_space<vmem>>) attributes {dimension_semantics = [], scalar_prefetch = 0 : i64, scratch_operands = 0 : i64, tpu.core_type = #tpu.core_type<tc>} {
    %c0 = arith.constant 0 : index
    %c0_0 = arith.constant 0 : index
    %0 = vector.load %arg0[%c0, %c0_0] : memref<16x32xf32, #tpu.memory_space<vmem>>, vector<16x32xf32>
    %1 = tpu.iota {dimensions = array<i32: 0>} : vector<16x1xi32>
    %c8_i32 = arith.constant 8 : i32
    %c0_i32 = arith.constant 0 : i32
    %2 = arith.cmpi eq, %c8_i32, %c0_i32 : i32
    %c1_i32 = arith.constant 1 : i32
    %3 = arith.select %2, %c1_i32, %c8_i32 : i32
    %4 = vector.broadcast %3 : i32 to vector<16x1xi32>
    %5 = arith.remsi %1, %4 : vector<16x1xi32>
    %c0_i32_1 = arith.constant 0 : i32
    %6 = vector.broadcast %c0_i32_1 : i32 to vector<16x1xi32>
    %7 = arith.cmpi ne, %5, %6 : vector<16x1xi32>
    %c0_i32_2 = arith.constant 0 : i32
    %8 = vector.broadcast %c0_i32_2 : i32 to vector<16x1xi32>
    %9 = arith.cmpi slt, %5, %8 : vector<16x1xi32>
    %c0_i32_3 = arith.constant 0 : i32
    %10 = arith.cmpi slt, %3, %c0_i32_3 : i32
    %11 = vector.broadcast %10 : i1 to vector<16x1xi1>
    %12 = vector.broadcast %11 : vector<16x1xi1> to vector<16x1xi1>
    %13 = arith.xori %9, %12 : vector<16x1xi1>
    %14 = arith.andi %13, %7 : vector<16x1xi1>
    %15 = vector.broadcast %3 : i32 to vector<16x1xi32>
    %16 = arith.addi %5, %15 : vector<16x1xi32>
    %17 = arith.select %14, %16, %5 : vector<16x1xi1>, vector<16x1xi32>
    %c0_i32_4 = arith.constant 0 : i32
    %18 = vector.broadcast %c0_i32_4 : i32 to vector<16x1xi32>
    %19 = arith.cmpi eq, %17, %18 : vector<16x1xi32>
    %c7_i32 = arith.constant 7 : i32
    %20 = vector.broadcast %c7_i32 : i32 to vector<16x1xi32>
    %21 = arith.cmpi eq, %17, %20 : vector<16x1xi32>
    %cst = arith.constant 0.000000e+00 : f32
    %22 = vector.broadcast %cst : f32 to vector<1x32xf32>
    %23 = vector.extract_strided_slice %0 {offsets = [0, 0], sizes = [15, 32], strides = [1, 1]} : vector<16x32xf32> to vector<15x32xf32>
    %24 = tpu.concatenate %22, %23 in 0 : vector<1x32xf32>, vector<15x32xf32> -> vector<16x32xf32>
    %cst_5 = arith.constant 0.000000e+00 : f32
    %25 = vector.shape_cast %19 : vector<16x1xi1> to vector<16x1xi1>
    %26 = vector.broadcast %25 : vector<16x1xi1> to vector<16x32xi1>
    %27 = vector.broadcast %cst_5 : f32 to vector<16x32xf32>
    %28 = arith.select %26, %27, %24 : vector<16x32xi1>, vector<16x32xf32>
    %29 = vector.extract_strided_slice %0 {offsets = [1, 0], sizes = [15, 32], strides = [1, 1]} : vector<16x32xf32> to vector<15x32xf32>
    %30 = tpu.concatenate %29, %22 in 0 : vector<15x32xf32>, vector<1x32xf32> -> vector<16x32xf32>
    %cst_6 = arith.constant 0.000000e+00 : f32
    %31 = vector.shape_cast %21 : vector<16x1xi1> to vector<16x1xi1>
    %32 = vector.broadcast %31 : vector<16x1xi1> to vector<16x32xi1>
    %33 = vector.broadcast %cst_6 : f32 to vector<16x32xf32>
    %34 = arith.select %32, %33, %30 : vector<16x32xi1>, vector<16x32xf32>
    %35 = tpu.concatenate %28, %0, %34 in 1 : vector<16x32xf32>, vector<16x32xf32>, vector<16x32xf32> -> vector<16x96xf32>
    %c0_7 = arith.constant 0 : index
    %c0_8 = arith.constant 0 : index
    %36 = vector.load %arg1[%c0_7, %c0_8] : memref<96x32xf32, #tpu.memory_space<vmem>>, vector<96x32xf32>
    %cst_9 = arith.constant dense<0.000000e+00> : vector<16x32xf32>
    %37 = tpu.matmul %35, %36, %cst_9 {dimension_numbers = #tpu.dot_dimension_numbers<[1], [0], [0], [1], [0, 0, 1, 1], [], []>} : vector<16x96xf32>, vector<96x32xf32>, vector<16x32xf32> -> vector<16x32xf32>
    %c0_10 = arith.constant 0 : index
    %c0_11 = arith.constant 0 : index
    %38 = vector.load %arg2[%c0_10, %c0_11] : memref<1x32xf32, #tpu.memory_space<vmem>>, vector<1x32xf32>
    %39 = vector.broadcast %38 : vector<1x32xf32> to vector<16x32xf32>
    %40 = arith.addf %37, %39 : vector<16x32xf32>
    %cst_12 = arith.constant dense<0.000000e+00> : vector<16xf32>
    %41 = vector.multi_reduction <add>, %40, %cst_12 [1] : vector<16x32xf32> to vector<16xf32>
    %42 = vector.shape_cast %41 : vector<16xf32> to vector<16x1xf32>
    %cst_13 = arith.constant 3.200000e+01 : f32
    %43 = vector.broadcast %cst_13 : f32 to vector<16x1xf32>
    %44 = arith.divf %42, %43 : vector<16x1xf32>
    %45 = vector.broadcast %44 : vector<16x1xf32> to vector<16x32xf32>
    %46 = arith.subf %40, %45 : vector<16x32xf32>
    %47 = arith.mulf %46, %46 : vector<16x32xf32>
    %cst_14 = arith.constant dense<0.000000e+00> : vector<16xf32>
    %48 = vector.multi_reduction <add>, %47, %cst_14 [1] : vector<16x32xf32> to vector<16xf32>
    %49 = vector.shape_cast %48 : vector<16xf32> to vector<16x1xf32>
    %cst_15 = arith.constant 3.200000e+01 : f32
    %50 = vector.broadcast %cst_15 : f32 to vector<16x1xf32>
    %51 = arith.divf %49, %50 : vector<16x1xf32>
    %52 = vector.broadcast %44 : vector<16x1xf32> to vector<16x32xf32>
    %53 = arith.subf %40, %52 : vector<16x32xf32>
    %cst_16 = arith.constant 9.99999974E-6 : f32
    %54 = vector.broadcast %cst_16 : f32 to vector<16x1xf32>
    %55 = arith.addf %51, %54 : vector<16x1xf32>
    %56 = math.rsqrt %55 : vector<16x1xf32>
    %57 = vector.broadcast %56 : vector<16x1xf32> to vector<16x32xf32>
    %58 = arith.mulf %53, %57 : vector<16x32xf32>
    %c0_17 = arith.constant 0 : index
    %c0_18 = arith.constant 0 : index
    %59 = vector.load %arg3[%c0_17, %c0_18] : memref<1x32xf32, #tpu.memory_space<vmem>>, vector<1x32xf32>
    %60 = vector.broadcast %59 : vector<1x32xf32> to vector<16x32xf32>
    %61 = arith.mulf %58, %60 : vector<16x32xf32>
    %c0_19 = arith.constant 0 : index
    %c0_20 = arith.constant 0 : index
    %62 = vector.load %arg4[%c0_19, %c0_20] : memref<1x32xf32, #tpu.memory_space<vmem>>, vector<1x32xf32>
    %63 = vector.broadcast %62 : vector<1x32xf32> to vector<16x32xf32>
    %64 = arith.addf %61, %63 : vector<16x32xf32>
    %cst_21 = arith.constant 0.000000e+00 : f32
    %65 = vector.broadcast %cst_21 : f32 to vector<16x32xf32>
    %66 = arith.maximumf %64, %65 : vector<16x32xf32>
    %cst_22 = arith.constant 0.000000e+00 : f32
    %67 = vector.broadcast %cst_22 : f32 to vector<1x32xf32>
    %68 = vector.extract_strided_slice %66 {offsets = [0, 0], sizes = [15, 32], strides = [1, 1]} : vector<16x32xf32> to vector<15x32xf32>
    %69 = tpu.concatenate %67, %68 in 0 : vector<1x32xf32>, vector<15x32xf32> -> vector<16x32xf32>
    %cst_23 = arith.constant 0.000000e+00 : f32
    %70 = vector.shape_cast %19 : vector<16x1xi1> to vector<16x1xi1>
    %71 = vector.broadcast %70 : vector<16x1xi1> to vector<16x32xi1>
    %72 = vector.broadcast %cst_23 : f32 to vector<16x32xf32>
    %73 = arith.select %71, %72, %69 : vector<16x32xi1>, vector<16x32xf32>
    %74 = vector.extract_strided_slice %66 {offsets = [1, 0], sizes = [15, 32], strides = [1, 1]} : vector<16x32xf32> to vector<15x32xf32>
    %75 = tpu.concatenate %74, %67 in 0 : vector<15x32xf32>, vector<1x32xf32> -> vector<16x32xf32>
    %cst_24 = arith.constant 0.000000e+00 : f32
    %76 = vector.shape_cast %21 : vector<16x1xi1> to vector<16x1xi1>
    %77 = vector.broadcast %76 : vector<16x1xi1> to vector<16x32xi1>
    %78 = vector.broadcast %cst_24 : f32 to vector<16x32xf32>
    %79 = arith.select %77, %78, %75 : vector<16x32xi1>, vector<16x32xf32>
    %80 = tpu.concatenate %73, %66, %79 in 1 : vector<16x32xf32>, vector<16x32xf32>, vector<16x32xf32> -> vector<16x96xf32>
    %c0_25 = arith.constant 0 : index
    %c0_26 = arith.constant 0 : index
    %81 = vector.load %arg5[%c0_25, %c0_26] : memref<96x32xf32, #tpu.memory_space<vmem>>, vector<96x32xf32>
    %cst_27 = arith.constant dense<0.000000e+00> : vector<16x32xf32>
    %82 = tpu.matmul %80, %81, %cst_27 {dimension_numbers = #tpu.dot_dimension_numbers<[1], [0], [0], [1], [0, 0, 1, 1], [], []>} : vector<16x96xf32>, vector<96x32xf32>, vector<16x32xf32> -> vector<16x32xf32>
    %c0_28 = arith.constant 0 : index
    %c0_29 = arith.constant 0 : index
    %83 = vector.load %arg6[%c0_28, %c0_29] : memref<1x32xf32, #tpu.memory_space<vmem>>, vector<1x32xf32>
    %84 = vector.broadcast %83 : vector<1x32xf32> to vector<16x32xf32>
    %85 = arith.addf %82, %84 : vector<16x32xf32>
    %cst_30 = arith.constant dense<0.000000e+00> : vector<16xf32>
    %86 = vector.multi_reduction <add>, %85, %cst_30 [1] : vector<16x32xf32> to vector<16xf32>
    %87 = vector.shape_cast %86 : vector<16xf32> to vector<16x1xf32>
    %cst_31 = arith.constant 3.200000e+01 : f32
    %88 = vector.broadcast %cst_31 : f32 to vector<16x1xf32>
    %89 = arith.divf %87, %88 : vector<16x1xf32>
    %90 = vector.broadcast %89 : vector<16x1xf32> to vector<16x32xf32>
    %91 = arith.subf %85, %90 : vector<16x32xf32>
    %92 = arith.mulf %91, %91 : vector<16x32xf32>
    %cst_32 = arith.constant dense<0.000000e+00> : vector<16xf32>
    %93 = vector.multi_reduction <add>, %92, %cst_32 [1] : vector<16x32xf32> to vector<16xf32>
    %94 = vector.shape_cast %93 : vector<16xf32> to vector<16x1xf32>
    %cst_33 = arith.constant 3.200000e+01 : f32
    %95 = vector.broadcast %cst_33 : f32 to vector<16x1xf32>
    %96 = arith.divf %94, %95 : vector<16x1xf32>
    %97 = vector.broadcast %89 : vector<16x1xf32> to vector<16x32xf32>
    %98 = arith.subf %85, %97 : vector<16x32xf32>
    %cst_34 = arith.constant 9.99999974E-6 : f32
    %99 = vector.broadcast %cst_34 : f32 to vector<16x1xf32>
    %100 = arith.addf %96, %99 : vector<16x1xf32>
    %101 = math.rsqrt %100 : vector<16x1xf32>
    %102 = vector.broadcast %101 : vector<16x1xf32> to vector<16x32xf32>
    %103 = arith.mulf %98, %102 : vector<16x32xf32>
    %c0_35 = arith.constant 0 : index
    %c0_36 = arith.constant 0 : index
    %104 = vector.load %arg7[%c0_35, %c0_36] : memref<1x32xf32, #tpu.memory_space<vmem>>, vector<1x32xf32>
    %105 = vector.broadcast %104 : vector<1x32xf32> to vector<16x32xf32>
    %106 = arith.mulf %103, %105 : vector<16x32xf32>
    %c0_37 = arith.constant 0 : index
    %c0_38 = arith.constant 0 : index
    %107 = vector.load %arg8[%c0_37, %c0_38] : memref<1x32xf32, #tpu.memory_space<vmem>>, vector<1x32xf32>
    %108 = vector.broadcast %107 : vector<1x32xf32> to vector<16x32xf32>
    %109 = arith.addf %106, %108 : vector<16x32xf32>
    %cst_39 = arith.constant 0.000000e+00 : f32
    %110 = vector.broadcast %cst_39 : f32 to vector<16x32xf32>
    %111 = arith.maximumf %109, %110 : vector<16x32xf32>
    %c0_40 = arith.constant 0 : index
    %c0_41 = arith.constant 0 : index
    %112 = vector.load %arg9[%c0_40, %c0_41] : memref<1x32xf32, #tpu.memory_space<vmem>>, vector<1x32xf32>
    %cst_42 = arith.constant dense<0.000000e+00> : vector<1x16xf32>
    %113 = tpu.matmul %112, %111, %cst_42 {dimension_numbers = #tpu.dot_dimension_numbers<[1], [1], [0], [0], [0, 0, 1, 0], [], []>} : vector<1x32xf32>, vector<16x32xf32>, vector<1x16xf32> -> vector<1x16xf32>
    %c0_43 = arith.constant 0 : index
    %c0_44 = arith.constant 0 : index
    %114 = vector.load %arg10[%c0_43, %c0_44] : memref<1x1xf32, #tpu.memory_space<vmem>>, vector<1x1xf32>
    %115 = vector.broadcast %114 : vector<1x1xf32> to vector<1x16xf32>
    %116 = arith.addf %113, %115 : vector<1x16xf32>
    %cst_45 = arith.constant 1.000000e+00 : f32
    %117 = vector.broadcast %cst_45 : f32 to vector<1x16xf32>
    %118 = arith.mulf %116, %117 : vector<1x16xf32>
    %c0_46 = arith.constant 0 : index
    %c0_47 = arith.constant 0 : index
    %119 = vector.load %arg11[%c0_46, %c0_47] : memref<1x16xf32, #tpu.memory_space<vmem>>, vector<1x16xf32>
    tpu.vector_store %arg11[%c0_46, %c0_47], %118 {strides = array<i32>} : memref<1x16xf32, #tpu.memory_space<vmem>>, vector<1x16xf32>,
    return
  }
}

</mosaic_0001>

<llo_original>
// kernel: tpu_custom_call.1
$region0: #{tpu_custom_call.1}
  #allocation0 [shape = 'u32[]', space=smem, size = 0x4, offset = 0x4, fixed_abs, tag = 'smem constant byte address 0x4 - core index']
  #allocation1 [shape = 'u32[72,128]{1,0:T(1,128)}', space=vmem, size = 0x9000, scoped, tag = 'internal scratch']
  #allocation2 [shape = 'f32[1,1]{1,0:T(1,128)S(1)}', space=vmem, size = 0x200, scoped, tag = 'scoped memory for tpu_custom_call.1']
  %s0 = inlined_call_operand.vmem [shape: f32[16,32], index: 0, kind: input, shape index: {}]
  %s1 = inlined_call_operand.vmem [shape: f32[96,32], index: 1, kind: input, shape index: {}]
  %s2 = inlined_call_operand.vmem [shape: f32[1,32], index: 2, kind: input, shape index: {}]
  %s3 = inlined_call_operand.vmem [shape: f32[1,32], index: 3, kind: input, shape index: {}]
  %s4 = inlined_call_operand.vmem [shape: f32[1,32], index: 4, kind: input, shape index: {}]
  %s5 = inlined_call_operand.vmem [shape: f32[96,32], index: 5, kind: input, shape index: {}]
  %s6 = inlined_call_operand.vmem [shape: f32[1,32], index: 6, kind: input, shape index: {}]
  %s7 = inlined_call_operand.vmem [shape: f32[1,32], index: 7, kind: input, shape index: {}]
  %s8 = inlined_call_operand.vmem [shape: f32[1,32], index: 8, kind: input, shape index: {}]
  %s9 = inlined_call_operand.vmem [shape: f32[1,32], index: 9, kind: input, shape index: {}]
  %s10 = inlined_call_operand.<no memory space> [shape: f32[1,1], index: 10, kind: input, shape index: {}]
  %s11 = inlined_call_operand.hbm [shape: f32[1,16], index: 11, kind: output, shape index: {}]
  %s12 = sld [smem:[#allocation0]]
  $region54: #{tpu_custom_call.1} parent=0
    _
  %s14 = ssub.s32 1, %s12
  %s15 = scalar_select 0, %s14, %s12
  %v16 = vstv %s10
  %17 = vst [vmem:[#allocation2] sm:$0x1] %v16
  $region1: #{tpu_custom_call.1} parent=0
    #allocation3 [shape = 'u8[512]{0}', space=vmem, size = 0x400, scoped, tag = 'output window, operand 0, single buffered']
    #allocation4 [shape = 's32[1]{0}', space=sflag, size = 0x4, scoped, tag = 'scoped memory for tpu_custom_call.1']
    %18 = vsyncpa [#allocation4], 0
    // Predicated region
    $region2: #{tpu_custom_call.1} parent=1 // pred_check
      _
    $region3: #{tpu_custom_call.1} parent=1 // pred_check_branch
      %20 = sbr.rel (0) target = $region5
    $region4: #{tpu_custom_call.1} parent=1 // pred_region
      _
    $region5: #{tpu_custom_call.1} parent=1 // pred_fallthru
      _
    // Predicated region
    $region6: #{tpu_custom_call.1} parent=1 // pred_check
      _
    $region7: #{tpu_custom_call.1} parent=1 // pred_check_branch
      %22 = sbr.rel (0) target = $region9
    $region8: #{tpu_custom_call.1} parent=1 // pred_region
      _
    $region9: #{tpu_custom_call.1} parent=1 // pred_fallthru
      _
    // Predicated region
    $region10: #{tpu_custom_call.1} parent=1 // pred_check
      _
    $region11: #{tpu_custom_call.1} parent=1 // pred_check_branch
      %24 = sbr.rel (0) target = $region13
    $region12: #{tpu_custom_call.1} parent=1 // pred_region
      _
    $region13: #{tpu_custom_call.1} parent=1 // pred_fallthru
      _
    // Predicated region
    $region14: #{tpu_custom_call.1} parent=1 // pred_check
      _
    $region15: #{tpu_custom_call.1} parent=1 // pred_check_branch
      %26 = sbr.rel (0) target = $region17
    $region16: #{tpu_custom_call.1} parent=1 // pred_region
      _
    $region17: #{tpu_custom_call.1} parent=1 // pred_fallthru
      _
    // Predicated region
    $region18: #{tpu_custom_call.1} parent=1 // pred_check
      _
    $region19: #{tpu_custom_call.1} parent=1 // pred_check_branch
      %28 = sbr.rel (0) target = $region21
    $region20: #{tpu_custom_call.1} parent=1 // pred_region
      _
    $region21: #{tpu_custom_call.1} parent=1 // pred_fallthru
      _
    // Predicated region
    $region22: #{tpu_custom_call.1} parent=1 // pred_check
      _
    $region23: #{tpu_custom_call.1} parent=1 // pred_check_branch
      %30 = sbr.rel (0) target = $region25
    $region24: #{tpu_custom_call.1} parent=1 // pred_region
      _
    $region25: #{tpu_custom_call.1} parent=1 // pred_fallthru
      _
    // Predicated region
    $region26: #{tpu_custom_call.1} parent=1 // pred_check
      _
    $region27: #{tpu_custom_call.1} parent=1 // pred_check_branch
      %32 = sbr.rel (0) target = $region29
    $region28: #{tpu_custom_call.1} parent=1 // pred_region
      _
    $region29: #{tpu_custom_call.1} parent=1 // pred_fallthru
      _
    // Predicated region
    $region30: #{tpu_custom_call.1} parent=1 // pred_check
      _
    $region31: #{tpu_custom_call.1} parent=1 // pred_check_branch
      %34 = sbr.rel (0) target = $region33
    $region32: #{tpu_custom_call.1} parent=1 // pred_region
      _
    $region33: #{tpu_custom_call.1} parent=1 // pred_fallthru
      _
    // Predicated region
    $region34: #{tpu_custom_call.1} parent=1 // pred_check
      _
    $region35: #{tpu_custom_call.1} parent=1 // pred_check_branch
      %36 = sbr.rel (0) target = $region37
    $region36: #{tpu_custom_call.1} parent=1 // pred_region
      _
    $region37: #{tpu_custom_call.1} parent=1 // pred_fallthru
      _
    // Predicated region
    $region38: #{tpu_custom_call.1} parent=1 // pred_check
      _
    $region39: #{tpu_custom_call.1} parent=1 // pred_check_branch
      %38 = sbr.rel (0) target = $region41
    $region40: #{tpu_custom_call.1} parent=1 // pred_region
      _
    $region41: #{tpu_custom_call.1} parent=1 // pred_fallthru
      _
    // Predicated region
    $region42: #{tpu_custom_call.1} parent=1 // pred_check
      _
    $region43: #{tpu_custom_call.1} parent=1 // pred_check_branch
      %40 = sbr.rel (0) target = $region45
    $region44: #{tpu_custom_call.1} parent=1 // pred_region
      _
    $region45: #{tpu_custom_call.1} parent=1 // pred_fallthru
      _
    %v41 = vld [vmem:[%s0] sm:$0xff]
    %v42 = vld [vmem:[%s0 + $0x8] sm:$0xff]
    %v43 = vlaneseq
    %v44 = vshrl.u32 %v43, 7
    %v45 = vadd.s32 %v44, 8
    %vm46 = vcmp.lt.s32.totalorder %v44, 0
    %v47 = vsub.s32 0, %v44
    %v48 = vsel %vm46, %v47, %v44
    %v49 = vshrl.u32 %v48, 3
    %v50 = vand.u32 %v48, 7
    %v51 = vsub.s32 0, %v50
    %v52 = vsel %vm46, %v51, %v50
    %vm53 = vcmp.lt.s32.totalorder %v45, 0
    %v54 = vsub.s32 0, %v45
    %v55 = vsel %vm53, %v54, %v45
    %v56 = vshrl.u32 %v55, 3
    %v57 = vand.u32 %v55, 7
    %v58 = vsub.s32 0, %v57
    %v59 = vsel %vm53, %v58, %v57
    %vm60 = vcmp.ne.s32.totalorder %v52, 0
    %vm61 = vcmp.ne.s32.totalorder %v59, 0
    %vm62 = vcmp.lt.s32.totalorder %v52, 0
    %vm63 = vcmp.lt.s32.totalorder %v59, 0
    %vm64 = vmand %vm62, %vm60
    %vm65 = vmand %vm63, %vm61
    %v66 = vadd.s32 %v52, 8
    %v67 = vadd.s32 %v59, 8
    %v68 = vsel %vm64, %v66, %v52
    %v69 = vsel %vm65, %v67, %v59
    %vm70 = vcmp.eq.s32.totalorder %v68, 0
    %vm71 = vcmp.eq.s32.totalorder %v69, 0
    %vm72 = vcmp.eq.s32.totalorder %v68, 7
    %vm73 = vcmp.eq.s32.totalorder %v69, 7
    %vm76 = vcmask 1040384
    %v77 = vrot.slane %v41, 7
    %v78 = vrot.slane %v42, 7
    %v79 = vsel %vm76, %v77, %v78
    %v82 = vsel %vm76, 0.0, %v77
    %v83 = vsel %vm70, 1, 0
    %v84 = vsel %vm71, 1, 0
    %vm85 = vcmp.eq.s32.totalorder %v83, 1
    %vm86 = vcmp.eq.s32.totalorder %v84, 1
    %v87 = vsel %vm85, 0.0, %v82
    %v88 = vsel %vm86, 0.0, %v79
    %vm89 = vcmask 1046528
    %v90 = vrot.slane %v41, 1
    %v91 = vrot.slane %v42, 1
    %v92 = vsel %vm89, %v90, %v91
    %v95 = vsel %vm89, %v91, 0.0
    %v96 = vsel %vm72, 1, 0
    %v97 = vsel %vm73, 1, 0
    %vm98 = vcmp.eq.s32.totalorder %v96, 1
    %vm99 = vcmp.eq.s32.totalorder %v97, 1
    %v100 = vsel %vm98, 0.0, %v92
    %v101 = vsel %vm99, 0.0, %v95
    %102 = vrot.lane.b32.xlu0 %v41, 32
    %v103 = vpop.permute.xlu0 %102
    %104 = vrot.lane.b32.xlu0 %v42, 32
    %v105 = vpop.permute.xlu0 %104
    %110 = vrot.lane.b32.xlu0 %v100, 64
    %v111 = vpop.permute.xlu0 %110
    %112 = vrot.lane.b32.xlu0 %v101, 64
    %v113 = vpop.permute.xlu0 %112
    %vm116 = vcmask 261120
    %v117 = vsel %vm116, %v87, %v103
    %v118 = vsel %vm116, %v88, %v105
    %vm119 = vcmask 523264
    %v120 = vsel %vm119, %v117, %v111
    %v121 = vsel %vm119, %v118, %v113
    %v122 = vld [vmem:[%s1] sm:$0xff]
    %v123 = vld [vmem:[%s1 + $0x8] sm:$0xff]
    %v124 = vld [vmem:[%s1 + $0x10] sm:$0xff]
    %v125 = vld [vmem:[%s1 + $0x18] sm:$0xff]
    %v126 = vld [vmem:[%s1 + $0x20] sm:$0xff]
    %v127 = vld [vmem:[%s1 + $0x28] sm:$0xff]
    %v128 = vld [vmem:[%s1 + $0x30] sm:$0xff]
    %v129 = vld [vmem:[%s1 + $0x38] sm:$0xff]
    %v130 = vld [vmem:[%s1 + $0x40] sm:$0xff]
    %v131 = vld [vmem:[%s1 + $0x48] sm:$0xff]
    %v132 = vld [vmem:[%s1 + $0x50] sm:$0xff]
    %v133 = vld [vmem:[%s1 + $0x58] sm:$0xff]
    %v134 = vld [vmem:[%s2] sm:$0x1]
    %v136 = vperm.slane %v134, 0
    %vm138 = vcmask 785408
    %v140 = vsel %vm138, %v120, 0
    %v143 = vsel %vm138, %v121, 0
    %145 = vmatpush.msra.mxu0 0.0
    %146 = vmatpush.msra.mxu0 0.0
    %147 = vmatpush.msra.mxu0 0.0
    %148 = vmatpush.msra.mxu0 0.0
    %149 = vmatpush.msra.mxu0 %v133
    %150 = vmatpush.msra.mxu0 %v132
    %151 = vmatpush.msra.mxu0 %v131
    %152 = vmatpush.msra.mxu0 %v130
    %153 = vmatpush.msra.mxu0 %v129
    %154 = vmatpush.msra.mxu0 %v128
    %155 = vmatpush.msra.mxu0 %v127
    %156 = vmatpush.msra.mxu0 %v126
    %157 = vmatpush.msra.mxu0 %v125
    %158 = vmatpush.msra.mxu0 %v124
    %159 = vmatpush.msra.mxu0 %v123
    %160 = vmatpush.msra.mxu0 %v122
    %161 = vmatmul.f32.gmra.mxu0 %v140
    %v162 = vpop.f32.mrf.mxu0
    %v163 = vadd.f32 %v136, %v162
    %164 = vmatmul.f32.gmra.mxu0 %v143
    %v165 = vpop.f32.mrf.mxu0
    %v166 = vadd.f32 %v136, %v165
    %167 = vdwg.mxu0
    %v168 = vsel %vm116, %v163, 0.0
    %169 = vadd.xlane.f32.xlu0 %v168
    %v170 = vpop.xlane.xlu0 %169
    %v171 = vsel %vm116, %v166, 0.0
    %172 = vadd.xlane.f32.xlu0 %v171
    %v173 = vpop.xlane.xlu0 %172
    %v174 = vrcp.pop 32.0
    %v175 = vmul.f32 32.0, %v174
    %v176 = vsub.f32 1.0, %v175
    %v177 = vmul.f32 %v174, %v176
    %v178 = vadd.f32 %v174, %v177
    %vm179 = vweird.f32 %v174
    %v180 = vsel %vm179, %v174, %v178
    %v181 = vmul.f32 %v170, %v180
    %v182 = vmul.f32 %v173, %v180
    %v183 = vsub.f32 %v163, %v181
    %v184 = vsub.f32 %v166, %v182
    %v185 = vmul.f32 %v183, %v183
    %v186 = vmul.f32 %v184, %v184
    %v187 = vsel %vm116, %v185, 0.0
    %188 = vadd.xlane.f32.xlu0 %v187
    %v189 = vpop.xlane.xlu0 %188
    %v190 = vsel %vm116, %v186, 0.0
    %191 = vadd.xlane.f32.xlu0 %v190
    %v192 = vpop.xlane.xlu0 %191
    %v193 = vmul.f32 %v189, %v180
    %v194 = vmul.f32 %v192, %v180
    %v195 = vadd.f32 %v193, 1e-05
    %v196 = vadd.f32 %v194, 1e-05
    %v197 = vrsqrt.pop %v195
    %v198 = vmul.f32 %v197, %v195
    %v199 = vmul.f32 %v198, %v197
    %v200 = vmul.f32 0.5, %v199
    %v201 = vsub.f32 1.5, %v200
    %v202 = vmul.f32 %v197, %v201
    %vm203 = vweird.f32 %v195
    %vm204 = vweird.f32 %v197
    %vm205 = vmor %vm203, %vm204
    %v206 = vsel %vm205, %v197, %v202
    %v207 = vrsqrt.pop %v196
    %v208 = vmul.f32 %v207, %v196
    %v209 = vmul.f32 %v208, %v207
    %v210 = vmul.f32 0.5, %v209
    %v211 = vsub.f32 1.5, %v210
    %v212 = vmul.f32 %v207, %v211
    %vm213 = vweird.f32 %v196
    %vm214 = vweird.f32 %v207
    %vm215 = vmor %vm213, %vm214
    %v216 = vsel %vm215, %v207, %v212
    %v217 = vmul.f32 %v183, %v206
    %v218 = vmul.f32 %v184, %v216
    %v219 = vld [vmem:[%s3] sm:$0x1]
    %v221 = vperm.slane %v219, 0
    %v223 = vmul.f32 %v217, %v221
    %v224 = vmul.f32 %v218, %v221
    %v225 = vld [vmem:[%s4] sm:$0x1]
    %v227 = vperm.slane %v225, 0
    %v229 = vadd.f32 %v223, %v227
    %v230 = vadd.f32 %v224, %v227
    %v231 = vmax.f32 %v229, 0.0
    %v232 = vmax.f32 %v230, 0.0
    %v235 = vrot.slane %v231, 7
    %v236 = vrot.slane %v232, 7
    %v237 = vsel %vm76, %v235, %v236
    %v240 = vsel %vm76, 0.0, %v235
    %v241 = vsel %vm85, 0.0, %v240
    %v242 = vsel %vm86, 0.0, %v237
    %v243 = vrot.slane %v231, 1
    %v244 = vrot.slane %v232, 1
    %v245 = vsel %vm89, %v243, %v244
    %v248 = vsel %vm89, %v244, 0.0
    %v249 = vsel %vm98, 0.0, %v245
    %v250 = vsel %vm99, 0.0, %v248
    %251 = vrot.lane.b32.xlu0 %v231, 32
    %v252 = vpop.permute.xlu0 %251
    %253 = vrot.lane.b32.xlu0 %v232, 32
    %v254 = vpop.permute.xlu0 %253
    %259 = vrot.lane.b32.xlu0 %v249, 64
    %v260 = vpop.permute.xlu0 %259
    %261 = vrot.lane.b32.xlu0 %v250, 64
    %v262 = vpop.permute.xlu0 %261
    %v265 = vsel %vm116, %v241, %v252
    %v266 = vsel %vm116, %v242, %v254
    %v267 = vsel %vm119, %v265, %v260
    %v268 = vsel %vm119, %v266, %v262
    %v269 = vld [vmem:[%s5] sm:$0xff]
    %v270 = vld [vmem:[%s5 + $0x8] sm:$0xff]
    %v271 = vld [vmem:[%s5 + $0x10] sm:$0xff]
    %v272 = vld [vmem:[%s5 + $0x18] sm:$0xff]
    %v273 = vld [vmem:[%s5 + $0x20] sm:$0xff]
    %v274 = vld [vmem:[%s5 + $0x28] sm:$0xff]
    %v275 = vld [vmem:[%s5 + $0x30] sm:$0xff]
    %v276 = vld [vmem:[%s5 + $0x38] sm:$0xff]
    %v277 = vld [vmem:[%s5 + $0x40] sm:$0xff]
    %v278 = vld [vmem:[%s5 + $0x48] sm:$0xff]
    %v279 = vld [vmem:[%s5 + $0x50] sm:$0xff]
    %v280 = vld [vmem:[%s5 + $0x58] sm:$0xff]
    %v281 = vld [vmem:[%s6] sm:$0x1]
    %v283 = vperm.slane %v281, 0
    %v286 = vsel %vm138, %v267, 0
    %v289 = vsel %vm138, %v268, 0
    %291 = vmatpush.msra.mxu0 0.0
    %292 = vmatpush.msra.mxu0 0.0
    %293 = vmatpush.msra.mxu0 0.0
    %294 = vmatpush.msra.mxu0 0.0
    %295 = vmatpush.msra.mxu0 %v280
    %296 = vmatpush.msra.mxu0 %v279
    %297 = vmatpush.msra.mxu0 %v278
    %298 = vmatpush.msra.mxu0 %v277
    %299 = vmatpush.msra.mxu0 %v276
    %300 = vmatpush.msra.mxu0 %v275
    %301 = vmatpush.msra.mxu0 %v274
    %302 = vmatpush.msra.mxu0 %v273
    %303 = vmatpush.msra.mxu0 %v272
    %304 = vmatpush.msra.mxu0 %v271
    %305 = vmatpush.msra.mxu0 %v270
    %306 = vmatpush.msra.mxu0 %v269
    %307 = vmatmul.f32.gmra.mxu0 %v286
    %v308 = vpop.f32.mrf.mxu0
    %v309 = vadd.f32 %v283, %v308
    %310 = vmatmul.f32.gmra.mxu0 %v289
    %v311 = vpop.f32.mrf.mxu0
    %v312 = vadd.f32 %v283, %v311
    %313 = vdwg.mxu0
    %v314 = vsel %vm116, %v309, 0.0
    %315 = vadd.xlane.f32.xlu0 %v314
    %v316 = vpop.xlane.xlu0 %315
    %v317 = vsel %vm116, %v312, 0.0
    %318 = vadd.xlane.f32.xlu0 %v317
    %v319 = vpop.xlane.xlu0 %318
    %v320 = vmul.f32 %v316, %v180
    %v321 = vmul.f32 %v319, %v180
    %v322 = vsub.f32 %v309, %v320
    %v323 = vsub.f32 %v312, %v321
    %v324 = vmul.f32 %v322, %v322
    %v325 = vmul.f32 %v323, %v323
    %v326 = vsel %vm116, %v324, 0.0
    %327 = vadd.xlane.f32.xlu0 %v326
    %v328 = vpop.xlane.xlu0 %327
    %v329 = vsel %vm116, %v325, 0.0
    %330 = vadd.xlane.f32.xlu0 %v329
    %v331 = vpop.xlane.xlu0 %330
    %v332 = vmul.f32 %v328, %v180
    %v333 = vmul.f32 %v331, %v180
    %v334 = vadd.f32 %v332, 1e-05
    %v335 = vadd.f32 %v333, 1e-05
    %v336 = vrsqrt.pop %v334
    %v337 = vmul.f32 %v336, %v334
    %v338 = vmul.f32 %v337, %v336
    %v339 = vmul.f32 0.5, %v338
    %v340 = vsub.f32 1.5, %v339
    %v341 = vmul.f32 %v336, %v340
    %vm342 = vweird.f32 %v334
    %vm343 = vweird.f32 %v336
    %vm344 = vmor %vm342, %vm343
    %v345 = vsel %vm344, %v336, %v341
    %v346 = vrsqrt.pop %v335
    %v347 = vmul.f32 %v346, %v335
    %v348 = vmul.f32 %v347, %v346
    %v349 = vmul.f32 0.5, %v348
    %v350 = vsub.f32 1.5, %v349
    %v351 = vmul.f32 %v346, %v350
    %vm352 = vweird.f32 %v335
    %vm353 = vweird.f32 %v346
    %vm354 = vmor %vm352, %vm353
    %v355 = vsel %vm354, %v346, %v351
    %v356 = vmul.f32 %v322, %v345
    %v357 = vmul.f32 %v323, %v355
    %v358 = vld [vmem:[%s7] sm:$0x1]
    %v360 = vperm.slane %v358, 0
    %v362 = vmul.f32 %v356, %v360
    %v363 = vmul.f32 %v357, %v360
    %v364 = vld [vmem:[%s8] sm:$0x1]
    %v366 = vperm.slane %v364, 0
    %v368 = vadd.f32 %v362, %v366
    %v369 = vadd.f32 %v363, %v366
    %v370 = vmax.f32 %v368, 0.0
    %v371 = vmax.f32 %v369, 0.0
    %v372 = vld [vmem:[%s9] sm:$0x1]
    %v373 = vld [vmem:[#allocation2] sm:$0x1]
    %375 = vset.pattern.permute.xlu0 0
    %376 = vperm.xlu0 %375, %v373
    %v377 = vpop.permute.xlu0 %376
    %v379 = vperm.slane %v377, 0
    %v381 = vsel %vm116, %v372, 0
    %v384 = vsel %vm116, %v370, 0
    %v387 = vsel %vm116, %v371, 0
    %389 = vmatpush.xpose.msra.mxu0 0.0
    %390 = vmatpush.xpose.msra.mxu0 0.0
    %391 = vmatpush.xpose.msra.mxu0 0.0
    %392 = vmatpush.xpose.msra.mxu0 0.0
    %393 = vmatpush.xpose.msra.mxu0 0.0
    %394 = vmatpush.xpose.msra.mxu0 0.0
    %395 = vmatpush.xpose.msra.mxu0 0.0
    %396 = vmatpush.xpose.msra.mxu0 0.0
    %397 = vmatpush.xpose.msra.mxu0 0.0
    %398 = vmatpush.xpose.msra.mxu0 0.0
    %399 = vmatpush.xpose.msra.mxu0 0.0
    %400 = vmatpush.xpose.msra.mxu0 0.0
    %401 = vmatpush.xpose.msra.mxu0 0.0
    %402 = vmatpush.xpose.msra.mxu0 0.0
    %403 = vmatpush.xpose.msra.mxu0 %v387
    %404 = vmatpush.xpose.msra.mxu0 %v384
    %405 = vmatmul.f32.gmra.mxu0 %v381
    %v406 = vpop.f32.mrf.mxu0
    %v407 = vadd.f32 %v379, %v406
    %408 = vdwg.mxu0
    %vm409 = vcmask 122880
    %410 = vst.msk [vmem:[#allocation3] sm:$0x1] %vm409, %v407
    // Predicated region
    $region46: #{tpu_custom_call.1} parent=1 // pred_check
      _
    $region47: #{tpu_custom_call.1} parent=1 // pred_check_branch
      %412 = sbr.rel (0) target = $region49
    $region48: #{tpu_custom_call.1} parent=1 // pred_region
      %414 = vsyncadd [#allocation4], 0
      %s416 = sshll.u32 [#allocation3], 4
      %s417 = int_to_ptr.vmem [resolvable:$true] %s416
      %s418 = sshll.u32 %s11, 4
      %s419 = int_to_ptr.hbm [resolvable:$true] %s418
      %421 = dma.vmem_to_hbm [thread:$0]  %s417, 16, %s419, [#allocation4]
    $region49: #{tpu_custom_call.1} parent=1 // pred_fallthru
      _
    // Predicated region
    $region50: #{tpu_custom_call.1} parent=1 // pred_check
      _
    $region51: #{tpu_custom_call.1} parent=1 // pred_check_branch
      %423 = sbr.rel (0) target = $region53
    $region52: #{tpu_custom_call.1} parent=1 // pred_region
      %425 = dma.done [#allocation4], 16
    $region53: #{tpu_custom_call.1} parent=1 // pred_fallthru
      _
    %426 = vsyncpa [#allocation4], 1

</llo_original>
